<compile_context>
chip_gen: v5e
topology: v5e:2x2
jax: 0.10.0
libtpu: 0.0.40
codegen_flags: <defaults>
</compile_context>

<pallas_src>
import jax
import jax.numpy as jnp
from jax.experimental import pallas as pl
from jax.experimental.pallas import tpu as pltpu


def _dense_kernel(w_ref, l_ref, c_ref, g_ref):
    # w_ref : (1, C, 1)   conv weight (resident across the whole grid)
    # l_ref : (TB, C, W)  TB batch rows per grid step
    # c_ref : (TB, W)     pre-softmax logits (dense sublanes)
    # g_ref : (TB, C)     attention-weighted channel summary (dense sublanes)
    l = l_ref[...]
    w = w_ref[...]
    # 1x1 conv over channels: broadcast-multiply + reduce over C -> dense (TB, W).
    c = jnp.sum(l * w, axis=1)
    # Softmax over W on dense vregs (TB rows packed into sublanes).
    m = jnp.max(c, axis=-1, keepdims=True)
    e = jnp.exp(c - m)
    s = jnp.sum(e, axis=-1, keepdims=True)
    p = e * pl.reciprocal(s, approx=False)             # normalized attention (TB, W)
    # g[b, ch] = sum_w p[b, w] * l[b, ch, w]
    g = jnp.sum(l * p[:, None, :], axis=2)             # (TB, C)
    c_ref[...] = c.astype(c_ref.dtype)
    g_ref[...] = g.astype(g_ref.dtype)


def _stripe_kernel(w_ref, l_ref, c_ref, g_ref):
    # Fallback path: identical math, rank-preserving (keepdims) shapes only.
    # c_ref : (TB, 1, W);  g_ref : (TB, 1, C)
    l = l_ref[...]                                     # (TB, C, W)
    w = w_ref[...]                                     # (1, C, 1)
    c = jnp.sum(l * w, axis=1, keepdims=True)          # (TB, 1, W)
    m = jnp.max(c, axis=-1, keepdims=True)             # (TB, 1, 1)
    e = jnp.exp(c - m)                                 # (TB, 1, W)
    s = jnp.sum(e, axis=-1, keepdims=True)             # (TB, 1, 1)
    inv_s = pl.reciprocal(s, approx=False)
    g_un = jax.lax.dot_general(
        e, l,
        dimension_numbers=(((2,), (2,)), ((0,), (0,))),
        preferred_element_type=jnp.float32)            # (TB, 1, C)
    g = g_un * inv_s                                   # fold softmax denom into small result
    c_ref[...] = c.astype(c_ref.dtype)
    g_ref[...] = g.astype(g_ref.dtype)


def _choose_block_batch(N, C, W, itemsize, target_bytes, cap_bytes):
    """Pick tb (batch rows per grid step) from a VMEM budget."""
    row = max(1, C * W * itemsize)
    tb = max(1, int(target_bytes) // row)
    if tb >= 8:
        tb = (tb // 8) * 8                 # dense sublanes
    elif 8 * row <= cap_bytes:
        tb = 8                             # pay a little extra VMEM for density
    n_ceil8 = ((N + 7) // 8) * 8
    if tb >= 8:
        tb = min(tb, n_ceil8)
        # Keep at least two grid blocks when there is enough work (v7x: 2 TCs).
        if N >= 16 and tb >= n_ceil8:
            tb = max(8, (((n_ceil8 // 2) + 7) // 8) * 8)
    else:
        tb = min(tb, N)                    # very large rows: stripe path handles this
    return max(1, tb)


_DENSE_OK = None  # None = untried, True/False after the first attempt


def linear_attention_block(l, weight, *, block_batch=None,
                           vmem_target_bytes=4 * 1024 * 1024):
    """l: (N, C, W); weight: (1, C).  Returns (c: (N, 1, W), g2: (N, C))."""
    global _DENSE_OK
    N, C, W = l.shape
    itemsize = jnp.dtype(l.dtype).itemsize

    if block_batch is None:
        tb = _choose_block_batch(N, C, W, itemsize, vmem_target_bytes,
                                 cap_bytes=8 * 1024 * 1024)
    else:
        tb = max(1, int(block_batch))

    n_pad = pl.cdiv(N, tb) * tb
    # Zero-padded batch rows give c=0 -> uniform softmax -> g=0; sliced off below.
    l_p = l if n_pad == N else jnp.pad(l, ((0, n_pad - N), (0, 0), (0, 0)))

    # Pre-shape the weight so the kernel needs no relayout: (1, C, 1).
    w3 = weight.reshape(1, C, 1).astype(l.dtype)
    grid = (n_pad // tb,)

    # VMEM: double-buffered l block + elementwise temporaries + output blocks.
    est = 4 * tb * C * W * itemsize + 4 * tb * (W + C) * itemsize + (1 << 20)
    compiler_params = pltpu.CompilerParams(
        dimension_semantics=("parallel",),
        vmem_limit_bytes=int(min(max(est, 32 * 1024 * 1024), 48 * 1024 * 1024)),
    )
    cost = pl.CostEstimate(
        flops=4 * N * C * W,
        transcendentals=N * W,
        bytes_accessed=int((N * C * W + N * W + N * C + C) * itemsize),
    )
    in_specs = [
        pl.BlockSpec((1, C, 1), lambda i: (0, 0, 0)),    # weight (resident)
        pl.BlockSpec((tb, C, W), lambda i: (i, 0, 0)),   # tb batch rows of l
    ]

    dense_legal = (tb % 8 == 0) or (n_pad == tb)
    if dense_legal and _DENSE_OK is not False:
        try:
            c2, g2 = pl.pallas_call(
                _dense_kernel,
                out_shape=(jax.ShapeDtypeStruct((n_pad, W), l.dtype),
                           jax.ShapeDtypeStruct((n_pad, C), l.dtype)),
                grid=grid,
                in_specs=in_specs,
                out_specs=[pl.BlockSpec((tb, W), lambda i: (i, 0)),
                           pl.BlockSpec((tb, C), lambda i: (i, 0))],
                compiler_params=compiler_params,
                cost_estimate=cost,
            )(w3, l_p)
            jax.block_until_ready((c2, g2))
            _DENSE_OK = True
            return c2[:N].reshape(N, 1, W), g2[:N]
        except Exception:
            _DENSE_OK = False  # fall back to the rank-preserving stripe kernel

    c3, g3 = pl.pallas_call(
        _stripe_kernel,
        out_shape=(jax.ShapeDtypeStruct((n_pad, 1, W), l.dtype),
                   jax.ShapeDtypeStruct((n_pad, 1, C), l.dtype)),
        grid=grid,
        in_specs=in_specs,
        out_specs=[pl.BlockSpec((tb, 1, W), lambda i: (i, 0, 0)),
                   pl.BlockSpec((tb, 1, C), lambda i: (i, 0, 0))],
        compiler_params=compiler_params,
        cost_estimate=cost,
    )(w3, l_p)
    return c3[:N], g3[:N, 0, :]


def _reference(l, weight):
    # Pure-JAX reference mirroring the PyTorch forward.
    c = jnp.einsum("oc,ncw->now", weight, l)          # (N, 1, W)
    a = jax.nn.softmax(c, axis=-1)                    # softmax over W
    g2 = jnp.sum(a * l, axis=-1)                      # (N, C)
    return c, g2


if __name__ == "__main__":
    key = jax.random.PRNGKey(0)

    # Shape 1: tiny, single grid block.
    N, C, W = 2, 4, 16
    k_l, k_w, k_l2 = jax.random.split(key, 3)
    l = jax.random.normal(k_l, (N, C, W), dtype=jnp.float32)
    weight = jax.random.normal(k_w, (1, C), dtype=jnp.float32) * 0.1

    c_out, g2_out = linear_attention_block(l, weight)
    jax.block_until_ready((c_out, g2_out))
    c_ref, g2_ref = _reference(l, weight)
    assert c_out.shape == (N, 1, W) and g2_out.shape == (N, C)
    assert jnp.allclose(c_out, c_ref, atol=1e-5, rtol=1e-5)
    assert jnp.allclose(g2_out, g2_ref, atol=1e-5, rtol=1e-5)

    # Shape 2: exercises multi-block grid + batch padding.
    N2, C2, W2 = 20, 8, 128
    l2 = jax.random.normal(k_l2, (N2, C2, W2), dtype=jnp.float32)
    w2 = jax.random.normal(k_w, (1, C2), dtype=jnp.float32) * 0.1
    c_out2, g2_out2 = linear_attention_block(l2, w2)
    jax.block_until_ready((c_out2, g2_out2))
    c_ref2, g2_ref2 = _reference(l2, w2)
    assert c_out2.shape == (N2, 1, W2) and g2_out2.shape == (N2, C2)
    assert jnp.allclose(c_out2, c_ref2, atol=1e-5, rtol=1e-5)
    assert jnp.allclose(g2_out2, g2_ref2, atol=1e-5, rtol=1e-5)

    print("KERNEL_OK")
</pallas_src>

<mosaic_0001>
module attributes {stable_mosaic.version = 11 : i64} {
  func.func @_dense_kernel(%arg0: i32, %arg1: memref<1x4x1xf32, #tpu.memory_space<vmem>>, %arg2: memref<8x4x16xf32, #tpu.memory_space<vmem>>, %arg3: memref<8x16xf32, #tpu.memory_space<vmem>>, %arg4: memref<8x4xf32, #tpu.memory_space<vmem>>) attributes {dimension_semantics = [#tpu.dimension_semantics<parallel>], iteration_bounds = array<i64: 1>, scalar_prefetch = 0 : i64, scratch_operands = 0 : i64, tpu.core_type = #tpu.core_type<tc>, window_params = [{pipeline_mode = #tpu.pipeline_mode<synchronous>, transform_indices = @transform_0, window_bounds = array<i64: 1, 4, 1>}, {transform_indices = @transform_1, window_bounds = array<i64: 8, 4, 16>}, {transform_indices = @transform_2, window_bounds = array<i64: 8, 16>}, {transform_indices = @transform_3, window_bounds = array<i64: 8, 4>}]} {
    %c0 = arith.constant 0 : index
    %c0_0 = arith.constant 0 : index
    %c0_1 = arith.constant 0 : index
    %0 = vector.load %arg2[%c0, %c0_0, %c0_1] : memref<8x4x16xf32, #tpu.memory_space<vmem>>, vector<8x4x16xf32>
    %c0_2 = arith.constant 0 : index
    %c0_3 = arith.constant 0 : index
    %c0_4 = arith.constant 0 : index
    %1 = vector.load %arg1[%c0_2, %c0_3, %c0_4] : memref<1x4x1xf32, #tpu.memory_space<vmem>>, vector<1x4x1xf32>
    %2 = vector.broadcast %1 : vector<1x4x1xf32> to vector<8x4x16xf32>
    %3 = arith.mulf %0, %2 : vector<8x4x16xf32>
    %cst = arith.constant dense<0.000000e+00> : vector<8x16xf32>
    %4 = vector.multi_reduction <add>, %3, %cst [1] : vector<8x4x16xf32> to vector<8x16xf32>
    %cst_5 = arith.constant dense<0xFF800000> : vector<8xf32>
    %5 = vector.multi_reduction <maximumf>, %4, %cst_5 [1] : vector<8x16xf32> to vector<8xf32>
    %6 = vector.shape_cast %5 : vector<8xf32> to vector<8x1xf32>
    %7 = vector.broadcast %6 : vector<8x1xf32> to vector<8x16xf32>
    %8 = arith.subf %4, %7 : vector<8x16xf32>
    %9 = math.exp %8 : vector<8x16xf32>
    %cst_6 = arith.constant dense<0.000000e+00> : vector<8xf32>
    %10 = vector.multi_reduction <add>, %9, %cst_6 [1] : vector<8x16xf32> to vector<8xf32>
    %11 = vector.shape_cast %10 : vector<8xf32> to vector<8x1xf32>
    %12 = tpu.reciprocal %11 : vector<8x1xf32> -> vector<8x1xf32>
    %13 = vector.broadcast %12 : vector<8x1xf32> to vector<8x16xf32>
    %14 = arith.mulf %9, %13 : vector<8x16xf32>
    %15 = vector.shape_cast %14 : vector<8x16xf32> to vector<8x1x16xf32>
    %16 = vector.broadcast %15 : vector<8x1x16xf32> to vector<8x4x16xf32>
    %17 = arith.mulf %0, %16 : vector<8x4x16xf32>
    %cst_7 = arith.constant dense<0.000000e+00> : vector<8x4xf32>
    %18 = vector.multi_reduction <add>, %17, %cst_7 [2] : vector<8x4x16xf32> to vector<8x4xf32>
    %c0_8 = arith.constant 0 : index
    %c0_9 = arith.constant 0 : index
    %19 = vector.load %arg3[%c0_8, %c0_9] : memref<8x16xf32, #tpu.memory_space<vmem>>, vector<8x16xf32>
    tpu.vector_store %arg3[%c0_8, %c0_9], %4 {strides = array<i32>} : memref<8x16xf32, #tpu.memory_space<vmem>>, vector<8x16xf32>,
    %c0_10 = arith.constant 0 : index
    %c0_11 = arith.constant 0 : index
    %20 = vector.load %arg4[%c0_10, %c0_11] : memref<8x4xf32, #tpu.memory_space<vmem>>, vector<8x4xf32>
    tpu.vector_store %arg4[%c0_10, %c0_11], %18 {strides = array<i32>} : memref<8x4xf32, #tpu.memory_space<vmem>>, vector<8x4xf32>,
    return
  }
  func.func @transform_0(%arg0: i32) -> (i32, i32, i32) {
    %c0_i32 = arith.constant 0 : i32
    %c0_i32_0 = arith.constant 0 : i32
    %c0_i32_1 = arith.constant 0 : i32
    %c0_i32_2 = arith.constant 0 : i32
    return %c0_i32, %c0_i32_0, %c0_i32_1 : i32, i32, i32
  }
  func.func @transform_1(%arg0: i32) -> (i32, i32, i32) {
    %c0_i32 = arith.constant 0 : i32
    %c0_i32_0 = arith.constant 0 : i32
    %c0_i32_1 = arith.constant 0 : i32
    return %arg0, %c0_i32, %c0_i32_0 : i32, i32, i32
  }
  func.func @transform_2(%arg0: i32) -> (i32, i32) {
    %c0_i32 = arith.constant 0 : i32
    %c0_i32_0 = arith.constant 0 : i32
    return %arg0, %c0_i32 : i32, i32
  }
  func.func @transform_3(%arg0: i32) -> (i32, i32) {
    %c0_i32 = arith.constant 0 : i32
    %c0_i32_0 = arith.constant 0 : i32
    return %arg0, %c0_i32 : i32, i32
  }
}

module attributes {stable_mosaic.version = 11 : i64} {
  func.func @_stripe_kernel(%arg0: i32, %arg1: memref<1x4x1xf32, #tpu.memory_space<vmem>>, %arg2: memref<8x4x16xf32, #tpu.memory_space<vmem>>, %arg3: memref<8x1x16xf32, #tpu.memory_space<vmem>>, %arg4: memref<8x1x4xf32, #tpu.memory_space<vmem>>) attributes {dimension_semantics = [#tpu.dimension_semantics<parallel>], iteration_bounds = array<i64: 1>, scalar_prefetch = 0 : i64, scratch_operands = 0 : i64, tpu.core_type = #tpu.core_type<tc>, window_params = [{pipeline_mode = #tpu.pipeline_mode<synchronous>, transform_indices = @transform_0, window_bounds = array<i64: 1, 4, 1>}, {transform_indices = @transform_1, window_bounds = array<i64: 8, 4, 16>}, {transform_indices = @transform_2, window_bounds = array<i64: 8, 1, 16>}, {transform_indices = @transform_3, window_bounds = array<i64: 8, 1, 4>}]} {
    %c0 = arith.constant 0 : index
    %c0_0 = arith.constant 0 : index
    %c0_1 = arith.constant 0 : index
    %0 = vector.load %arg2[%c0, %c0_0, %c0_1] : memref<8x4x16xf32, #tpu.memory_space<vmem>>, vector<8x4x16xf32>
    %c0_2 = arith.constant 0 : index
    %c0_3 = arith.constant 0 : index
    %c0_4 = arith.constant 0 : index
    %1 = vector.load %arg1[%c0_2, %c0_3, %c0_4] : memref<1x4x1xf32, #tpu.memory_space<vmem>>, vector<1x4x1xf32>
    %2 = vector.broadcast %1 : vector<1x4x1xf32> to vector<8x4x16xf32>
    %3 = arith.mulf %0, %2 : vector<8x4x16xf32>
    %cst = arith.constant dense<0.000000e+00> : vector<8x16xf32>
    %4 = vector.multi_reduction <add>, %3, %cst [1] : vector<8x4x16xf32> to vector<8x16xf32>
    %5 = vector.shape_cast %4 : vector<8x16xf32> to vector<8x1x16xf32>
    %cst_5 = arith.constant dense<0xFF800000> : vector<8x1xf32>
    %6 = vector.multi_reduction <maximumf>, %5, %cst_5 [2] : vector<8x1x16xf32> to vector<8x1xf32>
    %7 = vector.shape_cast %6 : vector<8x1xf32> to vector<8x1x1xf32>
    %8 = vector.broadcast %7 : vector<8x1x1xf32> to vector<8x1x16xf32>
    %9 = arith.subf %5, %8 : vector<8x1x16xf32>
    %10 = math.exp %9 : vector<8x1x16xf32>
    %cst_6 = arith.constant dense<0.000000e+00> : vector<8x1xf32>
    %11 = vector.multi_reduction <add>, %10, %cst_6 [2] : vector<8x1x16xf32> to vector<8x1xf32>
    %12 = vector.shape_cast %11 : vector<8x1xf32> to vector<8x1x1xf32>
    %13 = tpu.reciprocal %12 : vector<8x1x1xf32> -> vector<8x1x1xf32>
    %cst_7 = arith.constant dense<0.000000e+00> : vector<8x1x4xf32>
    %14 = tpu.matmul %10, %0, %cst_7 {dimension_numbers = #tpu.dot_dimension_numbers<[2], [2], [1], [1], [0, 0, 0, 1, 1, 1], [0], [0]>} : vector<8x1x16xf32>, vector<8x4x16xf32>, vector<8x1x4xf32> -> vector<8x1x4xf32>
    %15 = vector.broadcast %13 : vector<8x1x1xf32> to vector<8x1x4xf32>
    %16 = arith.mulf %14, %15 : vector<8x1x4xf32>
    %c0_8 = arith.constant 0 : index
    %c0_9 = arith.constant 0 : index
    %c0_10 = arith.constant 0 : index
    %17 = vector.load %arg3[%c0_8, %c0_9, %c0_10] : memref<8x1x16xf32, #tpu.memory_space<vmem>>, vector<8x1x16xf32>
    tpu.vector_store %arg3[%c0_8, %c0_9, %c0_10], %5 {strides = array<i32>} : memref<8x1x16xf32, #tpu.memory_space<vmem>>, vector<8x1x16xf32>,
    %c0_11 = arith.constant 0 : index
    %c0_12 = arith.constant 0 : index
    %c0_13 = arith.constant 0 : index
    %18 = vector.load %arg4[%c0_11, %c0_12, %c0_13] : memref<8x1x4xf32, #tpu.memory_space<vmem>>, vector<8x1x4xf32>
    tpu.vector_store %arg4[%c0_11, %c0_12, %c0_13], %16 {strides = array<i32>} : memref<8x1x4xf32, #tpu.memory_space<vmem>>, vector<8x1x4xf32>,
    return
  }
  func.func @transform_0(%arg0: i32) -> (i32, i32, i32) {
    %c0_i32 = arith.constant 0 : i32
    %c0_i32_0 = arith.constant 0 : i32
    %c0_i32_1 = arith.constant 0 : i32
    %c0_i32_2 = arith.constant 0 : i32
    return %c0_i32, %c0_i32_0, %c0_i32_1 : i32, i32, i32
  }
  func.func @transform_1(%arg0: i32) -> (i32, i32, i32) {
    %c0_i32 = arith.constant 0 : i32
    %c0_i32_0 = arith.constant 0 : i32
    %c0_i32_1 = arith.constant 0 : i32
    return %arg0, %c0_i32, %c0_i32_0 : i32, i32, i32
  }
  func.func @transform_2(%arg0: i32) -> (i32, i32, i32) {
    %c0_i32 = arith.constant 0 : i32
    %c0_i32_0 = arith.constant 0 : i32
    %c0_i32_1 = arith.constant 0 : i32
    return %arg0, %c0_i32, %c0_i32_0 : i32, i32, i32
  }
  func.func @transform_3(%arg0: i32) -> (i32, i32, i32) {
    %c0_i32 = arith.constant 0 : i32
    %c0_i32_0 = arith.constant 0 : i32
    %c0_i32_1 = arith.constant 0 : i32
    return %arg0, %c0_i32, %c0_i32_0 : i32, i32, i32
  }
}

</mosaic_0001>

<llo_original>
// kernel: tpu_custom_call.1
$region0: #{tpu_custom_call.1}
  #allocation0 [shape = 'u32[]', space=smem, size = 0x4, offset = 0x4, fixed_abs, tag = 'smem constant byte address 0x4 - core index']
  #allocation1 [shape = 'u32[72,128]{1,0:T(1,128)}', space=vmem, size = 0x9000, scoped, tag = 'internal scratch']
  %s0 = inlined_call_operand.vmem [shape: f32[1,4,1], index: 0, kind: input, shape index: {}]
  %s1 = inlined_call_operand.hbm [shape: f32[8,4,16], index: 1, kind: input, shape index: {}]
  %s2 = inlined_call_operand.hbm [shape: f32[8,16], index: 2, kind: output, shape index: {0}]
  %s3 = inlined_call_operand.vmem [shape: f32[8,4], index: 3, kind: output, shape index: {1}]
  %4 = xla_tuple %s2, %s3
  %s5 = sld [smem:[#allocation0]]
  $region30: #{tpu_custom_call.1} parent=0
    _
  %s7 = ssub.s32 1, %s5
  %s8 = scalar_select 0, %s7, %s5
  $region1: #{tpu_custom_call.1} parent=0
    #allocation2 [shape = 'u8[16384]{0}', space=vmem, size = 0x4000, scoped, tag = 'input window, operand 1, single buffered']
    #allocation3 [shape = 's32[1]{0}', space=sflag, size = 0x4, scoped, tag = 'scoped memory for tpu_custom_call.1']
    #allocation4 [shape = 's32[1]{0}', space=sflag, size = 0x4, scoped, tag = 'scoped memory for tpu_custom_call.1']
    #allocation5 [shape = 'u8[4096]{0}', space=vmem, size = 0x1000, scoped, tag = 'output window, operand 0, single buffered']
    %9 = vsyncpa [#allocation3], 0
    %10 = vsyncpa [#allocation4], 0
    // Predicated region
    $region2: #{tpu_custom_call.1} parent=1 // pred_check
      _
    $region3: #{tpu_custom_call.1} parent=1 // pred_check_branch
      %12 = sbr.rel (0) target = $region5
    $region4: #{tpu_custom_call.1} parent=1 // pred_region
      _
    $region5: #{tpu_custom_call.1} parent=1 // pred_fallthru
      _
    // Predicated region
    $region6: #{tpu_custom_call.1} parent=1 // pred_check
      _
    $region7: #{tpu_custom_call.1} parent=1 // pred_check_branch
      %14 = sbr.rel (0) target = $region9
    $region8: #{tpu_custom_call.1} parent=1 // pred_region
      %16 = vsyncadd [#allocation3], 0
      %s17 = sshll.u32 %s1, 4
      %s18 = int_to_ptr.hbm [resolvable:$true] %s17
      %s19 = sshll.u32 [#allocation2], 4
      %s20 = int_to_ptr.vmem [resolvable:$true] %s19
      %25 = dma.hbm_to_vmem [thread:$0]  %s18, 512, %s20, [#allocation3], 64, 64, 4
    $region9: #{tpu_custom_call.1} parent=1 // pred_fallthru
      _
    // Predicated region
    $region10: #{tpu_custom_call.1} parent=1 // pred_check
      _
    $region11: #{tpu_custom_call.1} parent=1 // pred_check_branch
      %27 = sbr.rel (0) target = $region13
    $region12: #{tpu_custom_call.1} parent=1 // pred_region
      %29 = dma.done [#allocation3], 512
    $region13: #{tpu_custom_call.1} parent=1 // pred_fallthru
      _
    %v30 = vld [vmem:[#allocation2] sm:$0xf]
    %v31 = vld [vmem:[#allocation2 + $0x4] sm:$0xf]
    %v32 = vld [vmem:[#allocation2 + $0x8] sm:$0xf]
    %v33 = vld [vmem:[#allocation2 + $0xc] sm:$0xf]
    %v34 = vld [vmem:[#allocation2 + $0x10] sm:$0xf]
    %v35 = vld [vmem:[#allocation2 + $0x14] sm:$0xf]
    %v36 = vld [vmem:[#allocation2 + $0x18] sm:$0xf]
    %v37 = vld [vmem:[#allocation2 + $0x1c] sm:$0xf]
    %v38 = vld [vmem:[%s0] sm:$0xf]
    %40 = vset.pattern.permute.xlu0 0
    %41 = vperm.xlu0 %40, %v38
    %v42 = vpop.permute.xlu0 %41
    %v44 = vmul.f32 %v30, %v42
    %v45 = vmul.f32 %v31, %v42
    %v46 = vmul.f32 %v32, %v42
    %v47 = vmul.f32 %v33, %v42
    %v48 = vmul.f32 %v34, %v42
    %v49 = vmul.f32 %v35, %v42
    %v50 = vmul.f32 %v36, %v42
    %v51 = vmul.f32 %v37, %v42
    %vm52 = vcmask 125952
    %v53 = vsel %vm52, %v44, 0.0
    %v54 = vrot.slane %v53, 4
    %v55 = vadd.f32 %v53, %v54
    %v56 = vrot.slane %v55, 2
    %v57 = vadd.f32 %v55, %v56
    %v58 = vrot.slane %v57, 1
    %v59 = vadd.f32 %v57, %v58
    %v60 = vsel %vm52, %v45, 0.0
    %v61 = vrot.slane %v60, 4
    %v62 = vadd.f32 %v60, %v61
    %v63 = vrot.slane %v62, 2
    %v64 = vadd.f32 %v62, %v63
    %v65 = vrot.slane %v64, 1
    %v66 = vadd.f32 %v64, %v65
    %v67 = vsel %vm52, %v46, 0.0
    %v68 = vrot.slane %v67, 4
    %v69 = vadd.f32 %v67, %v68
    %v70 = vrot.slane %v69, 2
    %v71 = vadd.f32 %v69, %v70
    %v72 = vrot.slane %v71, 1
    %v73 = vadd.f32 %v71, %v72
    %v74 = vsel %vm52, %v47, 0.0
    %v75 = vrot.slane %v74, 4
    %v76 = vadd.f32 %v74, %v75
    %v77 = vrot.slane %v76, 2
    %v78 = vadd.f32 %v76, %v77
    %v79 = vrot.slane %v78, 1
    %v80 = vadd.f32 %v78, %v79
    %v81 = vsel %vm52, %v48, 0.0
    %v82 = vrot.slane %v81, 4
    %v83 = vadd.f32 %v81, %v82
    %v84 = vrot.slane %v83, 2
    %v85 = vadd.f32 %v83, %v84
    %v86 = vrot.slane %v85, 1
    %v87 = vadd.f32 %v85, %v86
    %v88 = vsel %vm52, %v49, 0.0
    %v89 = vrot.slane %v88, 4
    %v90 = vadd.f32 %v88, %v89
    %v91 = vrot.slane %v90, 2
    %v92 = vadd.f32 %v90, %v91
    %v93 = vrot.slane %v92, 1
    %v94 = vadd.f32 %v92, %v93
    %v95 = vsel %vm52, %v50, 0.0
    %v96 = vrot.slane %v95, 4
    %v97 = vadd.f32 %v95, %v96
    %v98 = vrot.slane %v97, 2
    %v99 = vadd.f32 %v97, %v98
    %v100 = vrot.slane %v99, 1
    %v101 = vadd.f32 %v99, %v100
    %v102 = vsel %vm52, %v51, 0.0
    %v103 = vrot.slane %v102, 4
    %v104 = vadd.f32 %v102, %v103
    %v105 = vrot.slane %v104, 2
    %v106 = vadd.f32 %v104, %v105
    %v107 = vrot.slane %v106, 1
    %v108 = vadd.f32 %v106, %v107
    %vm117 = vcmask 1041409
    %v118 = vsel %vm117, %v66, %v59
    %vm119 = vcmask 1042434
    %v120 = vsel %vm119, %v73, %v118
    %vm121 = vcmask 1043459
    %v122 = vsel %vm121, %v80, %v120
    %vm123 = vcmask 1044484
    %v124 = vsel %vm123, %v87, %v122
    %vm125 = vcmask 1045509
    %v126 = vsel %vm125, %v94, %v124
    %vm127 = vcmask 1046534
    %v128 = vsel %vm127, %v101, %v126
    %vm129 = vcmask 1047559
    %v130 = vsel %vm129, %v108, %v128
    %vm132 = vcmask 130048
    %v133 = vsel %vm132, %v130, -inf
    %134 = vmax.xlane.f32.xlu0 %v133
    %v135 = vpop.xlane.xlu0 %134
    %v137 = vrot.slane %v135, 1
    %v138 = vrot.slane %v135, 2
    %v139 = vrot.slane %v135, 3
    %v140 = vrot.slane %v135, 4
    %v141 = vrot.slane %v135, 5
    %v142 = vrot.slane %v135, 6
    %v143 = vrot.slane %v135, 7
    %v152 = vsub.f32 %v59, %v135
    %v153 = vsub.f32 %v66, %v137
    %v154 = vsub.f32 %v73, %v138
    %v155 = vsub.f32 %v80, %v139
    %v156 = vsub.f32 %v87, %v140
    %v157 = vsub.f32 %v94, %v141
    %v158 = vsub.f32 %v101, %v142
    %v159 = vsub.f32 %v108, %v143
    %v160 = vmul.f32 %v152, 1.442695
    %v161 = vpow.pop %v160
    %v162 = vmul.f32 %v153, 1.442695
    %v163 = vpow.pop %v162
    %v164 = vmul.f32 %v154, 1.442695
    %v165 = vpow.pop %v164
    %v166 = vmul.f32 %v155, 1.442695
    %v167 = vpow.pop %v166
    %v168 = vmul.f32 %v156, 1.442695
    %v169 = vpow.pop %v168
    %v170 = vmul.f32 %v157, 1.442695
    %v171 = vpow.pop %v170
    %v172 = vmul.f32 %v158, 1.442695
    %v173 = vpow.pop %v172
    %v174 = vmul.f32 %v159, 1.442695
    %v175 = vpow.pop %v174
    %v184 = vrot.slane %v163, 7
    %v185 = vsel %vm117, %v184, %v161
    %v186 = vrot.slane %v165, 6
    %v187 = vsel %vm119, %v186, %v185
    %v188 = vrot.slane %v167, 5
    %v189 = vsel %vm121, %v188, %v187
    %v190 = vrot.slane %v169, 4
    %v191 = vsel %vm123, %v190, %v189
    %v192 = vrot.slane %v171, 3
    %v193 = vsel %vm125, %v192, %v191
    %v194 = vrot.slane %v173, 2
    %v195 = vsel %vm127, %v194, %v193
    %v196 = vrot.slane %v175, 1
    %v197 = vsel %vm129, %v196, %v195
    %v199 = vsel %vm132, %v197, 0.0
    %200 = vadd.xlane.f32.xlu0 %v199
    %v201 = vpop.xlane.xlu0 %200
    %v202 = vrcp.pop %v201
    %v203 = vmul.f32 %v201, %v202
    %v204 = vsub.f32 1.0, %v203
    %v205 = vmul.f32 %v202, %v204
    %v206 = vadd.f32 %v202, %v205
    %vm207 = vweird.f32 %v201
    %vm208 = vweird.f32 %v202
    %vm209 = vmor %vm207, %vm208
    %v210 = vsel %vm209, %v202, %v206
    %v211 = vand.u32 2147483647, %v201
    %vm212 = vcmp.eq.f32.partialorder %v211, 8.507059e+37
    %v213 = vand.u32 %v201, 2147483648
    %v214 = vor.u32 1.1754944e-38, %v213
    %v215 = vsel %vm212, %v214, %v210
    %v217 = vrot.slane %v215, 1
    %v218 = vrot.slane %v215, 2
    %v219 = vrot.slane %v215, 3
    %v220 = vrot.slane %v215, 4
    %v221 = vrot.slane %v215, 5
    %v222 = vrot.slane %v215, 6
    %v223 = vrot.slane %v215, 7
    %v232 = vmul.f32 %v161, %v215
    %v233 = vmul.f32 %v163, %v217
    %v234 = vmul.f32 %v165, %v218
    %v235 = vmul.f32 %v167, %v219
    %v236 = vmul.f32 %v169, %v220
    %v237 = vmul.f32 %v171, %v221
    %v238 = vmul.f32 %v173, %v222
    %v239 = vmul.f32 %v175, %v223
    %v240 = vperm.slane %v232, 0
    %v241 = vperm.slane %v233, 0
    %v242 = vperm.slane %v234, 0
    %v243 = vperm.slane %v235, 0
    %v244 = vperm.slane %v236, 0
    %v245 = vperm.slane %v237, 0
    %v246 = vperm.slane %v238, 0
    %v247 = vperm.slane %v239, 0
    %v248 = vmul.f32 %v30, %v240
    %v249 = vmul.f32 %v31, %v241
    %v250 = vmul.f32 %v32, %v242
    %v251 = vmul.f32 %v33, %v243
    %v252 = vmul.f32 %v34, %v244
    %v253 = vmul.f32 %v35, %v245
    %v254 = vmul.f32 %v36, %v246
    %v255 = vmul.f32 %v37, %v247
    %v256 = vsel %vm52, %v248, 0.0
    %257 = vadd.xlane.f32.xlu0 %v256
    %v258 = vpop.xlane.xlu0 %257
    %v259 = vsel %vm52, %v249, 0.0
    %260 = vadd.xlane.f32.xlu0 %v259
    %v261 = vpop.xlane.xlu0 %260
    %v262 = vsel %vm52, %v250, 0.0
    %263 = vadd.xlane.f32.xlu0 %v262
    %v264 = vpop.xlane.xlu0 %263
    %v265 = vsel %vm52, %v251, 0.0
    %266 = vadd.xlane.f32.xlu0 %v265
    %v267 = vpop.xlane.xlu0 %266
    %v268 = vsel %vm52, %v252, 0.0
    %269 = vadd.xlane.f32.xlu0 %v268
    %v270 = vpop.xlane.xlu0 %269
    %v271 = vsel %vm52, %v253, 0.0
    %272 = vadd.xlane.f32.xlu0 %v271
    %v273 = vpop.xlane.xlu0 %272
    %v274 = vsel %vm52, %v254, 0.0
    %275 = vadd.xlane.f32.xlu0 %v274
    %v276 = vpop.xlane.xlu0 %275
    %v277 = vsel %vm52, %v255, 0.0
    %278 = vadd.xlane.f32.xlu0 %v277
    %v279 = vpop.xlane.xlu0 %278
    %280 = vst.msk [vmem:[#allocation5] sm:$0xff] %vm132, %v130
    %v289 = vlaneseq
    %v290 = vand.u32 %v289, 127
    %v291 = vperm.slane %v258, %v290
    %v292 = vperm.slane %v261, %v290
    %v293 = vperm.slane %v264, %v290
    %v294 = vperm.slane %v267, %v290
    %v295 = vperm.slane %v270, %v290
    %v296 = vperm.slane %v273, %v290
    %v297 = vperm.slane %v276, %v290
    %v298 = vperm.slane %v279, %v290
    %v299 = vsel %vm117, %v292, %v291
    %v300 = vsel %vm119, %v293, %v299
    %v301 = vsel %vm121, %v294, %v300
    %v302 = vsel %vm123, %v295, %v301
    %v303 = vsel %vm125, %v296, %v302
    %v304 = vsel %vm127, %v297, %v303
    %v305 = vsel %vm129, %v298, %v304
    %vm307 = vcmask 31744
    %308 = vst.msk [vmem:[%s3] sm:$0xff] %vm307, %v305
    // Predicated region
    $region14: #{tpu_custom_call.1} parent=1 // pred_check
      _
    $region15: #{tpu_custom_call.1} parent=1 // pred_check_branch
      %310 = sbr.rel (0) target = $region17
    $region16: #{tpu_custom_call.1} parent=1 // pred_region
      %312 = vsyncadd [#allocation4], 0
      %s314 = sshll.u32 [#allocation5], 4
      %s315 = int_to_ptr.vmem [resolvable:$true] %s314
      %s316 = sshll.u32 %s2, 4
      %s317 = int_to_ptr.hbm [resolvable:$true] %s316
      %319 = dma.vmem_to_hbm [thread:$0]  %s315, 128, %s317, [#allocation4]
    $region17: #{tpu_custom_call.1} parent=1 // pred_fallthru
      _
    // Predicated region
    $region18: #{tpu_custom_call.1} parent=1 // pred_check
      _
    $region19: #{tpu_custom_call.1} parent=1 // pred_check_branch
      %321 = sbr.rel (0) target = $region21
    $region20: #{tpu_custom_call.1} parent=1 // pred_region
      _
    $region21: #{tpu_custom_call.1} parent=1 // pred_fallthru
      _
    // Predicated region
    $region22: #{tpu_custom_call.1} parent=1 // pred_check
      _
    $region23: #{tpu_custom_call.1} parent=1 // pred_check_branch
      %323 = sbr.rel (0) target = $region25
    $region24: #{tpu_custom_call.1} parent=1 // pred_region
      %325 = dma.done [#allocation4], 128
    $region25: #{tpu_custom_call.1} parent=1 // pred_fallthru
      _
    // Predicated region
    $region26: #{tpu_custom_call.1} parent=1 // pred_check
      _
    $region27: #{tpu_custom_call.1} parent=1 // pred_check_branch
      %327 = sbr.rel (0) target = $region29
    $region28: #{tpu_custom_call.1} parent=1 // pred_region
      _
    $region29: #{tpu_custom_call.1} parent=1 // pred_fallthru
      _
    %328 = vsyncpa [#allocation3], 1
    %329 = vsyncpa [#allocation4], 1

// kernel: tpu_custom_call.1
$region0: #{tpu_custom_call.1}
  #allocation0 [shape = 'u32[]', space=smem, size = 0x4, offset = 0x4, fixed_abs, tag = 'smem constant byte address 0x4 - core index']
  #allocation1 [shape = 'u32[72,128]{1,0:T(1,128)}', space=vmem, size = 0x9000, scoped, tag = 'internal scratch']
  %s0 = inlined_call_operand.vmem [shape: f32[1,4,1], index: 0, kind: input, shape index: {}]
  %s1 = inlined_call_operand.hbm [shape: f32[8,4,16], index: 1, kind: input, shape index: {}]
  %s2 = inlined_call_operand.hbm [shape: f32[8,1,16], index: 2, kind: output, shape index: {0}]
  %s3 = inlined_call_operand.vmem [shape: f32[8,1,4], index: 3, kind: output, shape index: {1}]
  %4 = xla_tuple %s2, %s3
  %s5 = sld [smem:[#allocation0]]
  $region30: #{tpu_custom_call.1} parent=0
    _
  %s7 = ssub.s32 1, %s5
  %s8 = scalar_select 0, %s7, %s5
  $region1: #{tpu_custom_call.1} parent=0
    #allocation2 [shape = 'u8[16384]{0}', space=vmem, size = 0x4000, scoped, tag = 'input window, operand 1, single buffered']
    #allocation3 [shape = 's32[1]{0}', space=sflag, size = 0x4, scoped, tag = 'scoped memory for tpu_custom_call.1']
    #allocation4 [shape = 's32[1]{0}', space=sflag, size = 0x4, scoped, tag = 'scoped memory for tpu_custom_call.1']
    #allocation5 [shape = 'u8[4096]{0}', space=vmem, size = 0x1000, scoped, tag = 'output window, operand 0, single buffered']
    %9 = vsyncpa [#allocation3], 0
    %10 = vsyncpa [#allocation4], 0
    // Predicated region
    $region2: #{tpu_custom_call.1} parent=1 // pred_check
      _
    $region3: #{tpu_custom_call.1} parent=1 // pred_check_branch
      %12 = sbr.rel (0) target = $region5
    $region4: #{tpu_custom_call.1} parent=1 // pred_region
      _
    $region5: #{tpu_custom_call.1} parent=1 // pred_fallthru
      _
    // Predicated region
    $region6: #{tpu_custom_call.1} parent=1 // pred_check
      _
    $region7: #{tpu_custom_call.1} parent=1 // pred_check_branch
      %14 = sbr.rel (0) target = $region9
    $region8: #{tpu_custom_call.1} parent=1 // pred_region
      %16 = vsyncadd [#allocation3], 0
      %s17 = sshll.u32 %s1, 4
      %s18 = int_to_ptr.hbm [resolvable:$true] %s17
      %s19 = sshll.u32 [#allocation2], 4
      %s20 = int_to_ptr.vmem [resolvable:$true] %s19
      %25 = dma.hbm_to_vmem [thread:$0]  %s18, 512, %s20, [#allocation3], 64, 64, 4
    $region9: #{tpu_custom_call.1} parent=1 // pred_fallthru
      _
    // Predicated region
    $region10: #{tpu_custom_call.1} parent=1 // pred_check
      _
    $region11: #{tpu_custom_call.1} parent=1 // pred_check_branch
      %27 = sbr.rel (0) target = $region13
    $region12: #{tpu_custom_call.1} parent=1 // pred_region
      %29 = dma.done [#allocation3], 512
    $region13: #{tpu_custom_call.1} parent=1 // pred_fallthru
      _
    %v30 = vld [vmem:[#allocation2] sm:$0xf]
    %v31 = vld [vmem:[#allocation2 + $0x4] sm:$0xf]
    %v32 = vld [vmem:[#allocation2 + $0x8] sm:$0xf]
    %v33 = vld [vmem:[#allocation2 + $0xc] sm:$0xf]
    %v34 = vld [vmem:[#allocation2 + $0x10] sm:$0xf]
    %v35 = vld [vmem:[#allocation2 + $0x14] sm:$0xf]
    %v36 = vld [vmem:[#allocation2 + $0x18] sm:$0xf]
    %v37 = vld [vmem:[#allocation2 + $0x1c] sm:$0xf]
    %v38 = vld [vmem:[%s0] sm:$0xf]
    %40 = vset.pattern.permute.xlu0 0
    %41 = vperm.xlu0 %40, %v38
    %v42 = vpop.permute.xlu0 %41
    %v44 = vmul.f32 %v30, %v42
    %v45 = vmul.f32 %v31, %v42
    %v46 = vmul.f32 %v32, %v42
    %v47 = vmul.f32 %v33, %v42
    %v48 = vmul.f32 %v34, %v42
    %v49 = vmul.f32 %v35, %v42
    %v50 = vmul.f32 %v36, %v42
    %v51 = vmul.f32 %v37, %v42
    %vm52 = vcmask 125952
    %v53 = vsel %vm52, %v44, 0.0
    %v54 = vrot.slane %v53, 4
    %v55 = vadd.f32 %v53, %v54
    %v56 = vrot.slane %v55, 2
    %v57 = vadd.f32 %v55, %v56
    %v58 = vrot.slane %v57, 1
    %v59 = vadd.f32 %v57, %v58
    %v60 = vsel %vm52, %v45, 0.0
    %v61 = vrot.slane %v60, 4
    %v62 = vadd.f32 %v60, %v61
    %v63 = vrot.slane %v62, 2
    %v64 = vadd.f32 %v62, %v63
    %v65 = vrot.slane %v64, 1
    %v66 = vadd.f32 %v64, %v65
    %v67 = vsel %vm52, %v46, 0.0
    %v68 = vrot.slane %v67, 4
    %v69 = vadd.f32 %v67, %v68
    %v70 = vrot.slane %v69, 2
    %v71 = vadd.f32 %v69, %v70
    %v72 = vrot.slane %v71, 1
    %v73 = vadd.f32 %v71, %v72
    %v74 = vsel %vm52, %v47, 0.0
    %v75 = vrot.slane %v74, 4
    %v76 = vadd.f32 %v74, %v75
    %v77 = vrot.slane %v76, 2
    %v78 = vadd.f32 %v76, %v77
    %v79 = vrot.slane %v78, 1
    %v80 = vadd.f32 %v78, %v79
    %v81 = vsel %vm52, %v48, 0.0
    %v82 = vrot.slane %v81, 4
    %v83 = vadd.f32 %v81, %v82
    %v84 = vrot.slane %v83, 2
    %v85 = vadd.f32 %v83, %v84
    %v86 = vrot.slane %v85, 1
    %v87 = vadd.f32 %v85, %v86
    %v88 = vsel %vm52, %v49, 0.0
    %v89 = vrot.slane %v88, 4
    %v90 = vadd.f32 %v88, %v89
    %v91 = vrot.slane %v90, 2
    %v92 = vadd.f32 %v90, %v91
    %v93 = vrot.slane %v92, 1
    %v94 = vadd.f32 %v92, %v93
    %v95 = vsel %vm52, %v50, 0.0
    %v96 = vrot.slane %v95, 4
    %v97 = vadd.f32 %v95, %v96
    %v98 = vrot.slane %v97, 2
    %v99 = vadd.f32 %v97, %v98
    %v100 = vrot.slane %v99, 1
    %v101 = vadd.f32 %v99, %v100
    %v102 = vsel %vm52, %v51, 0.0
    %v103 = vrot.slane %v102, 4
    %v104 = vadd.f32 %v102, %v103
    %v105 = vrot.slane %v104, 2
    %v106 = vadd.f32 %v104, %v105
    %v107 = vrot.slane %v106, 1
    %v108 = vadd.f32 %v106, %v107
    %vm109 = vcmask 130048
    %v110 = vsel %vm109, %v59, -inf
    %111 = vmax.xlane.f32.xlu0 %v110
    %v112 = vpop.xlane.xlu0 %111
    %v113 = vsel %vm109, %v66, -inf
    %114 = vmax.xlane.f32.xlu0 %v113
    %v115 = vpop.xlane.xlu0 %114
    %v116 = vsel %vm109, %v73, -inf
    %117 = vmax.xlane.f32.xlu0 %v116
    %v118 = vpop.xlane.xlu0 %117
    %v119 = vsel %vm109, %v80, -inf
    %120 = vmax.xlane.f32.xlu0 %v119
    %v121 = vpop.xlane.xlu0 %120
    %v122 = vsel %vm109, %v87, -inf
    %123 = vmax.xlane.f32.xlu0 %v122
    %v124 = vpop.xlane.xlu0 %123
    %v125 = vsel %vm109, %v94, -inf
    %126 = vmax.xlane.f32.xlu0 %v125
    %v127 = vpop.xlane.xlu0 %126
    %v128 = vsel %vm109, %v101, -inf
    %129 = vmax.xlane.f32.xlu0 %v128
    %v130 = vpop.xlane.xlu0 %129
    %v131 = vsel %vm109, %v108, -inf
    %132 = vmax.xlane.f32.xlu0 %v131
    %v133 = vpop.xlane.xlu0 %132
    %v134 = vsub.f32 %v59, %v112
    %v135 = vsub.f32 %v66, %v115
    %v136 = vsub.f32 %v73, %v118
    %v137 = vsub.f32 %v80, %v121
    %v138 = vsub.f32 %v87, %v124
    %v139 = vsub.f32 %v94, %v127
    %v140 = vsub.f32 %v101, %v130
    %v141 = vsub.f32 %v108, %v133
    %v142 = vmul.f32 %v134, 1.442695
    %v143 = vpow.pop %v142
    %v144 = vmul.f32 %v135, 1.442695
    %v145 = vpow.pop %v144
    %v146 = vmul.f32 %v136, 1.442695
    %v147 = vpow.pop %v146
    %v148 = vmul.f32 %v137, 1.442695
    %v149 = vpow.pop %v148
    %v150 = vmul.f32 %v138, 1.442695
    %v151 = vpow.pop %v150
    %v152 = vmul.f32 %v139, 1.442695
    %v153 = vpow.pop %v152
    %v154 = vmul.f32 %v140, 1.442695
    %v155 = vpow.pop %v154
    %v156 = vmul.f32 %v141, 1.442695
    %v157 = vpow.pop %v156
    %v158 = vsel %vm109, %v143, 0.0
    %159 = vadd.xlane.f32.xlu0 %v158
    %v160 = vpop.xlane.xlu0 %159
    %v161 = vsel %vm109, %v145, 0.0
    %162 = vadd.xlane.f32.xlu0 %v161
    %v163 = vpop.xlane.xlu0 %162
    %v164 = vsel %vm109, %v147, 0.0
    %165 = vadd.xlane.f32.xlu0 %v164
    %v166 = vpop.xlane.xlu0 %165
    %v167 = vsel %vm109, %v149, 0.0
    %168 = vadd.xlane.f32.xlu0 %v167
    %v169 = vpop.xlane.xlu0 %168
    %v170 = vsel %vm109, %v151, 0.0
    %171 = vadd.xlane.f32.xlu0 %v170
    %v172 = vpop.xlane.xlu0 %171
    %v173 = vsel %vm109, %v153, 0.0
    %174 = vadd.xlane.f32.xlu0 %v173
    %v175 = vpop.xlane.xlu0 %174
    %v176 = vsel %vm109, %v155, 0.0
    %177 = vadd.xlane.f32.xlu0 %v176
    %v178 = vpop.xlane.xlu0 %177
    %v179 = vsel %vm109, %v157, 0.0
    %180 = vadd.xlane.f32.xlu0 %v179
    %v181 = vpop.xlane.xlu0 %180
    %v182 = vrcp.pop %v160
    %v183 = vmul.f32 %v160, %v182
    %v184 = vsub.f32 1.0, %v183
    %v185 = vmul.f32 %v182, %v184
    %v186 = vadd.f32 %v182, %v185
    %vm187 = vweird.f32 %v160
    %vm188 = vweird.f32 %v182
    %vm189 = vmor %vm187, %vm188
    %v190 = vsel %vm189, %v182, %v186
    %v191 = vand.u32 2147483647, %v160
    %vm192 = vcmp.eq.f32.partialorder %v191, 8.507059e+37
    %v193 = vand.u32 %v160, 2147483648
    %v194 = vor.u32 1.1754944e-38, %v193
    %v195 = vsel %vm192, %v194, %v190
    %v196 = vrcp.pop %v163
    %v197 = vmul.f32 %v163, %v196
    %v198 = vsub.f32 1.0, %v197
    %v199 = vmul.f32 %v196, %v198
    %v200 = vadd.f32 %v196, %v199
    %vm201 = vweird.f32 %v163
    %vm202 = vweird.f32 %v196
    %vm203 = vmor %vm201, %vm202
    %v204 = vsel %vm203, %v196, %v200
    %v205 = vand.u32 2147483647, %v163
    %vm206 = vcmp.eq.f32.partialorder %v205, 8.507059e+37
    %v207 = vand.u32 %v163, 2147483648
    %v208 = vor.u32 1.1754944e-38, %v207
    %v209 = vsel %vm206, %v208, %v204
    %v210 = vrcp.pop %v166
    %v211 = vmul.f32 %v166, %v210
    %v212 = vsub.f32 1.0, %v211
    %v213 = vmul.f32 %v210, %v212
    %v214 = vadd.f32 %v210, %v213
    %vm215 = vweird.f32 %v166
    %vm216 = vweird.f32 %v210
    %vm217 = vmor %vm215, %vm216
    %v218 = vsel %vm217, %v210, %v214
    %v219 = vand.u32 2147483647, %v166
    %vm220 = vcmp.eq.f32.partialorder %v219, 8.507059e+37
    %v221 = vand.u32 %v166, 2147483648
    %v222 = vor.u32 1.1754944e-38, %v221
    %v223 = vsel %vm220, %v222, %v218
    %v224 = vrcp.pop %v169
    %v225 = vmul.f32 %v169, %v224
    %v226 = vsub.f32 1.0, %v225
    %v227 = vmul.f32 %v224, %v226
    %v228 = vadd.f32 %v224, %v227
    %vm229 = vweird.f32 %v169
    %vm230 = vweird.f32 %v224
    %vm231 = vmor %vm229, %vm230
    %v232 = vsel %vm231, %v224, %v228
    %v233 = vand.u32 2147483647, %v169
    %vm234 = vcmp.eq.f32.partialorder %v233, 8.507059e+37
    %v235 = vand.u32 %v169, 2147483648
    %v236 = vor.u32 1.1754944e-38, %v235
    %v237 = vsel %vm234, %v236, %v232
    %v238 = vrcp.pop %v172
    %v239 = vmul.f32 %v172, %v238
    %v240 = vsub.f32 1.0, %v239
    %v241 = vmul.f32 %v238, %v240
    %v242 = vadd.f32 %v238, %v241
    %vm243 = vweird.f32 %v172
    %vm244 = vweird.f32 %v238
    %vm245 = vmor %vm243, %vm244
    %v246 = vsel %vm245, %v238, %v242
    %v247 = vand.u32 2147483647, %v172
    %vm248 = vcmp.eq.f32.partialorder %v247, 8.507059e+37
    %v249 = vand.u32 %v172, 2147483648
    %v250 = vor.u32 1.1754944e-38, %v249
    %v251 = vsel %vm248, %v250, %v246
    %v252 = vrcp.pop %v175
    %v253 = vmul.f32 %v175, %v252
    %v254 = vsub.f32 1.0, %v253
    %v255 = vmul.f32 %v252, %v254
    %v256 = vadd.f32 %v252, %v255
    %vm257 = vweird.f32 %v175
    %vm258 = vweird.f32 %v252
    %vm259 = vmor %vm257, %vm258
    %v260 = vsel %vm259, %v252, %v256
    %v261 = vand.u32 2147483647, %v175
    %vm262 = vcmp.eq.f32.partialorder %v261, 8.507059e+37
    %v263 = vand.u32 %v175, 2147483648
    %v264 = vor.u32 1.1754944e-38, %v263
    %v265 = vsel %vm262, %v264, %v260
    %v266 = vrcp.pop %v178
    %v267 = vmul.f32 %v178, %v266
    %v268 = vsub.f32 1.0, %v267
    %v269 = vmul.f32 %v266, %v268
    %v270 = vadd.f32 %v266, %v269
    %vm271 = vweird.f32 %v178
    %vm272 = vweird.f32 %v266
    %vm273 = vmor %vm271, %vm272
    %v274 = vsel %vm273, %v266, %v270
    %v275 = vand.u32 2147483647, %v178
    %vm276 = vcmp.eq.f32.partialorder %v275, 8.507059e+37
    %v277 = vand.u32 %v178, 2147483648
    %v278 = vor.u32 1.1754944e-38, %v277
    %v279 = vsel %vm276, %v278, %v274
    %v280 = vrcp.pop %v181
    %v281 = vmul.f32 %v181, %v280
    %v282 = vsub.f32 1.0, %v281
    %v283 = vmul.f32 %v280, %v282
    %v284 = vadd.f32 %v280, %v283
    %vm285 = vweird.f32 %v181
    %vm286 = vweird.f32 %v280
    %vm287 = vmor %vm285, %vm286
    %v288 = vsel %vm287, %v280, %v284
    %v289 = vand.u32 2147483647, %v181
    %vm290 = vcmp.eq.f32.partialorder %v289, 8.507059e+37
    %v291 = vand.u32 %v181, 2147483648
    %v292 = vor.u32 1.1754944e-38, %v291
    %v293 = vsel %vm290, %v292, %v288
    %v295 = vsel %vm109, %v143, 0
    %v298 = vsel %vm109, %v30, 0
    %300 = vmatpush.xpose.msra.mxu0 0.0
    %301 = vmatpush.xpose.msra.mxu0 0.0
    %302 = vmatpush.xpose.msra.mxu0 0.0
    %303 = vmatpush.xpose.msra.mxu0 0.0
    %304 = vmatpush.xpose.msra.mxu0 0.0
    %305 = vmatpush.xpose.msra.mxu0 0.0
    %306 = vmatpush.xpose.msra.mxu0 0.0
    %307 = vmatpush.xpose.msra.mxu0 0.0
    %308 = vmatpush.xpose.msra.mxu0 0.0
    %309 = vmatpush.xpose.msra.mxu0 0.0
    %310 = vmatpush.xpose.msra.mxu0 0.0
    %311 = vmatpush.xpose.msra.mxu0 0.0
    %312 = vmatpush.xpose.msra.mxu0 0.0
    %313 = vmatpush.xpose.msra.mxu0 0.0
    %314 = vmatpush.xpose.msra.mxu0 0.0
    %315 = vmatpush.xpose.msra.mxu0 %v298
    %316 = vmatmul.f32.gmra.mxu0 %v295
    %v317 = vpop.f32.mrf.mxu0
    %v318 = vadd.f32 0.0, %v317
    %319 = vdwg.mxu0
    %v321 = vsel %vm109, %v145, 0
    %v324 = vsel %vm109, %v31, 0
    %326 = vmatpush.xpose.msra.mxu0 0.0
    %327 = vmatpush.xpose.msra.mxu0 0.0
    %328 = vmatpush.xpose.msra.mxu0 0.0
    %329 = vmatpush.xpose.msra.mxu0 0.0
    %330 = vmatpush.xpose.msra.mxu0 0.0
    %331 = vmatpush.xpose.msra.mxu0 0.0
    %332 = vmatpush.xpose.msra.mxu0 0.0
    %333 = vmatpush.xpose.msra.mxu0 0.0
    %334 = vmatpush.xpose.msra.mxu0 0.0
    %335 = vmatpush.xpose.msra.mxu0 0.0
    %336 = vmatpush.xpose.msra.mxu0 0.0
    %337 = vmatpush.xpose.msra.mxu0 0.0
    %338 = vmatpush.xpose.msra.mxu0 0.0
    %339 = vmatpush.xpose.msra.mxu0 0.0
    %340 = vmatpush.xpose.msra.mxu0 0.0
    %341 = vmatpush.xpose.msra.mxu0 %v324
    %342 = vmatmul.f32.gmra.mxu0 %v321
    %v343 = vpop.f32.mrf.mxu0
    %v344 = vadd.f32 0.0, %v343
    %345 = vdwg.mxu0
    %v347 = vsel %vm109, %v147, 0
    %v350 = vsel %vm109, %v32, 0
    %352 = vmatpush.xpose.msra.mxu0 0.0
    %353 = vmatpush.xpose.msra.mxu0 0.0
    %354 = vmatpush.xpose.msra.mxu0 0.0
    %355 = vmatpush.xpose.msra.mxu0 0.0
    %356 = vmatpush.xpose.msra.mxu0 0.0
    %357 = vmatpush.xpose.msra.mxu0 0.0
    %358 = vmatpush.xpose.msra.mxu0 0.0
    %359 = vmatpush.xpose.msra.mxu0 0.0
    %360 = vmatpush.xpose.msra.mxu0 0.0
    %361 = vmatpush.xpose.msra.mxu0 0.0
    %362 = vmatpush.xpose.msra.mxu0 0.0
    %363 = vmatpush.xpose.msra.mxu0 0.0
    %364 = vmatpush.xpose.msra.mxu0 0.0
    %365 = vmatpush.xpose.msra.mxu0 0.0
    %366 = vmatpush.xpose.msra.mxu0 0.0
    %367 = vmatpush.xpose.msra.mxu0 %v350
    %368 = vmatmul.f32.gmra.mxu0 %v347
    %v369 = vpop.f32.mrf.mxu0
    %v370 = vadd.f32 0.0, %v369
    %371 = vdwg.mxu0
    %v373 = vsel %vm109, %v149, 0
    %v376 = vsel %vm109, %v33, 0
    %378 = vmatpush.xpose.msra.mxu0 0.0
    %379 = vmatpush.xpose.msra.mxu0 0.0
    %380 = vmatpush.xpose.msra.mxu0 0.0
    %381 = vmatpush.xpose.msra.mxu0 0.0
    %382 = vmatpush.xpose.msra.mxu0 0.0
    %383 = vmatpush.xpose.msra.mxu0 0.0
    %384 = vmatpush.xpose.msra.mxu0 0.0
    %385 = vmatpush.xpose.msra.mxu0 0.0
    %386 = vmatpush.xpose.msra.mxu0 0.0
    %387 = vmatpush.xpose.msra.mxu0 0.0
    %388 = vmatpush.xpose.msra.mxu0 0.0
    %389 = vmatpush.xpose.msra.mxu0 0.0
    %390 = vmatpush.xpose.msra.mxu0 0.0
    %391 = vmatpush.xpose.msra.mxu0 0.0
    %392 = vmatpush.xpose.msra.mxu0 0.0
    %393 = vmatpush.xpose.msra.mxu0 %v376
    %394 = vmatmul.f32.gmra.mxu0 %v373
    %v395 = vpop.f32.mrf.mxu0
    %v396 = vadd.f32 0.0, %v395
    %397 = vdwg.mxu0
    %v399 = vsel %vm109, %v151, 0
    %v402 = vsel %vm109, %v34, 0
    %404 = vmatpush.xpose.msra.mxu0 0.0
    %405 = vmatpush.xpose.msra.mxu0 0.0
    %406 = vmatpush.xpose.msra.mxu0 0.0
    %407 = vmatpush.xpose.msra.mxu0 0.0
    %408 = vmatpush.xpose.msra.mxu0 0.0
    %409 = vmatpush.xpose.msra.mxu0 0.0
    %410 = vmatpush.xpose.msra.mxu0 0.0
    %411 = vmatpush.xpose.msra.mxu0 0.0
    %412 = vmatpush.xpose.msra.mxu0 0.0
    %413 = vmatpush.xpose.msra.mxu0 0.0
    %414 = vmatpush.xpose.msra.mxu0 0.0
    %415 = vmatpush.xpose.msra.mxu0 0.0
    %416 = vmatpush.xpose.msra.mxu0 0.0
    %417 = vmatpush.xpose.msra.mxu0 0.0
    %418 = vmatpush.xpose.msra.mxu0 0.0
    %419 = vmatpush.xpose.msra.mxu0 %v402
    %420 = vmatmul.f32.gmra.mxu0 %v399
    %v421 = vpop.f32.mrf.mxu0
    %v422 = vadd.f32 0.0, %v421
    %423 = vdwg.mxu0
    %v425 = vsel %vm109, %v153, 0
    %v428 = vsel %vm109, %v35, 0
    %430 = vmatpush.xpose.msra.mxu0 0.0
    %431 = vmatpush.xpose.msra.mxu0 0.0
    %432 = vmatpush.xpose.msra.mxu0 0.0
    %433 = vmatpush.xpose.msra.mxu0 0.0
    %434 = vmatpush.xpose.msra.mxu0 0.0
    %435 = vmatpush.xpose.msra.mxu0 0.0
    %436 = vmatpush.xpose.msra.mxu0 0.0
    %437 = vmatpush.xpose.msra.mxu0 0.0
    %438 = vmatpush.xpose.msra.mxu0 0.0
    %439 = vmatpush.xpose.msra.mxu0 0.0
    %440 = vmatpush.xpose.msra.mxu0 0.0
    %441 = vmatpush.xpose.msra.mxu0 0.0
    %442 = vmatpush.xpose.msra.mxu0 0.0
    %443 = vmatpush.xpose.msra.mxu0 0.0
    %444 = vmatpush.xpose.msra.mxu0 0.0
    %445 = vmatpush.xpose.msra.mxu0 %v428
    %446 = vmatmul.f32.gmra.mxu0 %v425
    %v447 = vpop.f32.mrf.mxu0
    %v448 = vadd.f32 0.0, %v447
    %449 = vdwg.mxu0
    %v451 = vsel %vm109, %v155, 0
    %v454 = vsel %vm109, %v36, 0
    %456 = vmatpush.xpose.msra.mxu0 0.0
    %457 = vmatpush.xpose.msra.mxu0 0.0
    %458 = vmatpush.xpose.msra.mxu0 0.0
    %459 = vmatpush.xpose.msra.mxu0 0.0
    %460 = vmatpush.xpose.msra.mxu0 0.0
    %461 = vmatpush.xpose.msra.mxu0 0.0
    %462 = vmatpush.xpose.msra.mxu0 0.0
    %463 = vmatpush.xpose.msra.mxu0 0.0
    %464 = vmatpush.xpose.msra.mxu0 0.0
    %465 = vmatpush.xpose.msra.mxu0 0.0
    %466 = vmatpush.xpose.msra.mxu0 0.0
    %467 = vmatpush.xpose.msra.mxu0 0.0
    %468 = vmatpush.xpose.msra.mxu0 0.0
    %469 = vmatpush.xpose.msra.mxu0 0.0
    %470 = vmatpush.xpose.msra.mxu0 0.0
    %471 = vmatpush.xpose.msra.mxu0 %v454
    %472 = vmatmul.f32.gmra.mxu0 %v451
    %v473 = vpop.f32.mrf.mxu0
    %v474 = vadd.f32 0.0, %v473
    %475 = vdwg.mxu0
    %v477 = vsel %vm109, %v157, 0
    %v480 = vsel %vm109, %v37, 0
    %482 = vmatpush.xpose.msra.mxu0 0.0
    %483 = vmatpush.xpose.msra.mxu0 0.0
    %484 = vmatpush.xpose.msra.mxu0 0.0
    %485 = vmatpush.xpose.msra.mxu0 0.0
    %486 = vmatpush.xpose.msra.mxu0 0.0
    %487 = vmatpush.xpose.msra.mxu0 0.0
    %488 = vmatpush.xpose.msra.mxu0 0.0
    %489 = vmatpush.xpose.msra.mxu0 0.0
    %490 = vmatpush.xpose.msra.mxu0 0.0
    %491 = vmatpush.xpose.msra.mxu0 0.0
    %492 = vmatpush.xpose.msra.mxu0 0.0
    %493 = vmatpush.xpose.msra.mxu0 0.0
    %494 = vmatpush.xpose.msra.mxu0 0.0
    %495 = vmatpush.xpose.msra.mxu0 0.0
    %496 = vmatpush.xpose.msra.mxu0 0.0
    %497 = vmatpush.xpose.msra.mxu0 %v480
    %498 = vmatmul.f32.gmra.mxu0 %v477
    %v499 = vpop.f32.mrf.mxu0
    %v500 = vadd.f32 0.0, %v499
    %501 = vdwg.mxu0
    %v502 = vmul.f32 %v318, %v195
    %v503 = vmul.f32 %v344, %v209
    %v504 = vmul.f32 %v370, %v223
    %v505 = vmul.f32 %v396, %v237
    %v506 = vmul.f32 %v422, %v251
    %v507 = vmul.f32 %v448, %v265
    %v508 = vmul.f32 %v474, %v279
    %v509 = vmul.f32 %v500, %v293
    %vm510 = vcmask 122880
    %511 = vst.msk [vmem:[#allocation5] sm:$0x1] %vm510, %v59
    %512 = vst.msk [vmem:[#allocation5 + $0x1] sm:$0x1] %vm510, %v66
    %513 = vst.msk [vmem:[#allocation5 + $0x2] sm:$0x1] %vm510, %v73
    %514 = vst.msk [vmem:[#allocation5 + $0x3] sm:$0x1] %vm510, %v80
    %515 = vst.msk [vmem:[#allocation5 + $0x4] sm:$0x1] %vm510, %v87
    %516 = vst.msk [vmem:[#allocation5 + $0x5] sm:$0x1] %vm510, %v94
    %517 = vst.msk [vmem:[#allocation5 + $0x6] sm:$0x1] %vm510, %v101
    %518 = vst.msk [vmem:[#allocation5 + $0x7] sm:$0x1] %vm510, %v108
    %vm519 = vcmask 24576
    %520 = vst.msk [vmem:[%s3] sm:$0x1] %vm519, %v502
    %521 = vst.msk [vmem:[%s3 + $0x1] sm:$0x1] %vm519, %v503
    %522 = vst.msk [vmem:[%s3 + $0x2] sm:$0x1] %vm519, %v504
    %523 = vst.msk [vmem:[%s3 + $0x3] sm:$0x1] %vm519, %v505
    %524 = vst.msk [vmem:[%s3 + $0x4] sm:$0x1] %vm519, %v506
    %525 = vst.msk [vmem:[%s3 + $0x5] sm:$0x1] %vm519, %v507
    %526 = vst.msk [vmem:[%s3 + $0x6] sm:$0x1] %vm519, %v508
    %527 = vst.msk [vmem:[%s3 + $0x7] sm:$0x1] %vm519, %v509
    // Predicated region
    $region14: #{tpu_custom_call.1} parent=1 // pred_check
      _
    $region15: #{tpu_custom_call.1} parent=1 // pred_check_branch
      %529 = sbr.rel (0) target = $region17
    $region16: #{tpu_custom_call.1} parent=1 // pred_region
      %531 = vsyncadd [#allocation4], 0
      %s532 = sshll.u32 [#allocation5], 4
      %s533 = int_to_ptr.vmem [resolvable:$true] %s532
      %s534 = sshll.u32 %s2, 4
      %s535 = int_to_ptr.hbm [resolvable:$true] %s534
      %540 = dma.vmem_to_hbm [thread:$0]  %s533, 128, %s535, [#allocation4], 16, 16, 1
    $region17: #{tpu_custom_call.1} parent=1 // pred_fallthru
      _
    // Predicated region
    $region18: #{tpu_custom_call.1} parent=1 // pred_check
      _
    $region19: #{tpu_custom_call.1} parent=1 // pred_check_branch
      %542 = sbr.rel (0) target = $region21
    $region20: #{tpu_custom_call.1} parent=1 // pred_region
      _
    $region21: #{tpu_custom_call.1} parent=1 // pred_fallthru
      _
    // Predicated region
    $region22: #{tpu_custom_call.1} parent=1 // pred_check
      _
    $region23: #{tpu_custom_call.1} parent=1 // pred_check_branch
      %544 = sbr.rel (0) target = $region25
    $region24: #{tpu_custom_call.1} parent=1 // pred_region
      %546 = dma.done [#allocation4], 128
    $region25: #{tpu_custom_call.1} parent=1 // pred_fallthru
      _
    // Predicated region
    $region26: #{tpu_custom_call.1} parent=1 // pred_check
      _
    $region27: #{tpu_custom_call.1} parent=1 // pred_check_branch
      %548 = sbr.rel (0) target = $region29
    $region28: #{tpu_custom_call.1} parent=1 // pred_region
      _
    $region29: #{tpu_custom_call.1} parent=1 // pred_fallthru
      _
    %549 = vsyncpa [#allocation3], 1
    %550 = vsyncpa [#allocation4], 1

</llo_original>
